<compile_context>
chip_gen: v5e
topology: v5e:2x2
jax: 0.10.0
libtpu: 0.0.40
codegen_flags: <defaults>
</compile_context>

<pallas_src>
import functools

import jax
import jax.numpy as jnp
import numpy as np
from jax.experimental import pallas as pl
from jax.experimental.pallas import tpu as pltpu


def _bnn_kernel(xT_ref, w1t_ref, b1_ref, w2_ref, b2_ref, epsT_ref, oT_ref, *, mm_precision):
    f32 = jnp.float32
    # fc1 (circulant-FFT mixing pre-folded into w1t_ref): (H,I) @ (I,Nb) -> (H,Nb), +bias, ReLU
    h = jnp.dot(w1t_ref[...], xT_ref[...],
                preferred_element_type=f32, precision=mm_precision) + b1_ref[...]
    h = jnp.maximum(h, 0.0)
    # fc2: (O,H) @ (H,Nb) -> (O,Nb)
    o = jnp.dot(w2_ref[...], h.astype(w2_ref.dtype),
                preferred_element_type=f32, precision=mm_precision) + b2_ref[...]
    # reparameterized sample: mean + exp(0.5*mean) * eps   (all f32 on VPU/EUP, lane-dense)
    oT_ref[...] = o + jnp.exp(0.5 * o) * epsT_ref[...]


def _pick_block(B, max_block=2048):
    """Batch block on the lane axis: one step for small B, else largest 128-multiple dividing B."""
    if B <= max_block:
        return B, 1
    for blk in (2048, 1024, 512, 256, 128):
        if B % blk == 0:
            return blk, B // blk
    # Fallback: whole batch resident in one step (feature dims are tiny, VMEM is fine).
    return B, 1


@jax.jit
def bnn_forward(x, w1t_eff, b1, w2, b2, eps):
    """x:(B,I)  w1t_eff:(H,I)  b1:(H,1)  w2:(O,H)  b2:(O,1)  eps:(B,O)  ->  (B,O) float32."""
    B, I = x.shape
    H = w1t_eff.shape[0]
    O = w2.shape[0]
    block_b, n_blocks = _pick_block(B)

    xT = x.T          # (I, B)  batch on lanes
    epsT = eps.T      # (O, B)

    # f32 operands -> exact (HIGHEST) MXU passes for the tight check; bf16 -> native bf16 MXU.
    mm_precision = jax.lax.Precision.HIGHEST if x.dtype == jnp.float32 else None
    kernel = functools.partial(_bnn_kernel, mm_precision=mm_precision)

    bytes_accessed = (xT.size * xT.dtype.itemsize
                      + epsT.size * epsT.dtype.itemsize
                      + B * O * 4                       # output
                      + w1t_eff.size * w1t_eff.dtype.itemsize
                      + w2.size * w2.dtype.itemsize
                      + b1.size * 4 + b2.size * 4)
    cost = pl.CostEstimate(flops=2 * B * (I * H + H * O),
                           transcendentals=B * O,
                           bytes_accessed=bytes_accessed)

    outT = pl.pallas_call(
        kernel,
        out_shape=jax.ShapeDtypeStruct((O, B), jnp.float32),
        grid_spec=pltpu.PrefetchScalarGridSpec(
            num_scalar_prefetch=0,
            grid=(n_blocks,),
            in_specs=[
                pl.BlockSpec((I, block_b), lambda i: (0, i)),   # xT        (streamed)
                pl.BlockSpec((H, I), lambda i: (0, 0)),         # W1_eff^T  (resident)
                pl.BlockSpec((H, 1), lambda i: (0, 0)),         # b1        (resident)
                pl.BlockSpec((O, H), lambda i: (0, 0)),         # W2        (resident)
                pl.BlockSpec((O, 1), lambda i: (0, 0)),         # b2        (resident)
                pl.BlockSpec((O, block_b), lambda i: (0, i)),   # epsT      (streamed)
            ],
            out_specs=pl.BlockSpec((O, block_b), lambda i: (0, i)),
        ),
        compiler_params=pltpu.CompilerParams(
            dimension_semantics=("parallel",)),
        cost_estimate=cost,
    )(xT, w1t_eff, b1, w2, b2, epsT)
    return outT.T   # (B, O)


def fold_fft_into_fc1_transposed(circulant, w1):
    """Return W1_eff^T = W1 @ M^T with M = Re(F C F G), so hT = W1_eff^T @ xT matches
    fc1(ifft(fft(x) @ fft(C)).real)."""
    n = circulant.shape[0]
    jk = np.outer(np.arange(n), np.arange(n))
    F = np.exp(-2j * np.pi * jk / n)        # row-wise DFT:  fft(v) == v @ F
    G = np.exp(+2j * np.pi * jk / n) / n    # row-wise IDFT: ifft(v) == v @ G
    C = np.asarray(circulant, dtype=np.float64)
    M = np.real(F @ C @ F @ G)              # (I, I): mixed = x @ M
    W1 = np.asarray(w1, dtype=np.float64)   # (H, I)
    return jnp.asarray((W1 @ M.T).astype(np.float32))   # (H, I)


if __name__ == "__main__":
    batch = 256            # whole batch fits in a single lane-dense grid step
    input_size = 16
    hidden_size = 32
    output_size = 8

    key = jax.random.PRNGKey(0)
    kx, kc, kw1, kb1, kw2, kb2, keps = jax.random.split(key, 7)

    x = jax.random.normal(kx, (batch, input_size), dtype=jnp.float32)
    circulant = jax.random.normal(kc, (input_size, input_size), dtype=jnp.float32)

    # nn.Linear parameters (deterministic synthetic init).
    w1 = jax.random.normal(kw1, (hidden_size, input_size), dtype=jnp.float32) * 0.05
    b1 = jax.random.normal(kb1, (hidden_size,), dtype=jnp.float32) * 0.05
    w2 = jax.random.normal(kw2, (output_size, hidden_size), dtype=jnp.float32) * 0.05
    b2 = jax.random.normal(kb2, (output_size,), dtype=jnp.float32) * 0.05

    # randn_like noise for the reparameterized sample (kept as an explicit input).
    eps = jax.random.normal(keps, (batch, output_size), dtype=jnp.float32)

    w1t_eff = fold_fft_into_fc1_transposed(circulant, w1)   # (H, I)
    b1c = b1.reshape(hidden_size, 1)                          # bias broadcast along lanes
    b2c = b2.reshape(output_size, 1)

    # Tight-precision path (f32 operands, HIGHEST MXU precision).
    out_f32 = jax.block_until_ready(bnn_forward(x, w1t_eff, b1c, w2, b2c, eps))

    # Fast path: bf16 matmul operands, f32 accumulation + f32 epilogue.
    out_bf16 = jax.block_until_ready(
        bnn_forward(x.astype(jnp.bfloat16),
                    w1t_eff.astype(jnp.bfloat16), b1c,
                    w2.astype(jnp.bfloat16), b2c, eps))

    # Host-side float64 reference mirroring the torch model exactly (np.fft).
    xn = np.asarray(x, dtype=np.float64)
    Cn = np.asarray(circulant, dtype=np.float64)
    W1 = np.asarray(w1, dtype=np.float64)
    B1 = np.asarray(b1, dtype=np.float64)
    W2 = np.asarray(w2, dtype=np.float64)
    B2 = np.asarray(b2, dtype=np.float64)
    En = np.asarray(eps, dtype=np.float64)

    fft_x = np.fft.fft(xn)                     # row-wise FFT of x
    circ_fft = np.fft.fft(Cn)                  # row-wise FFT of circulant matrix
    mixed = np.real(np.fft.ifft(fft_x @ circ_fft))
    h_ref = np.maximum(mixed @ W1.T + B1, 0.0)
    o_ref = h_ref @ W2.T + B2
    ref = o_ref + np.exp(0.5 * o_ref) * En

    assert np.allclose(np.asarray(out_f32, dtype=np.float64), ref,
                       atol=2e-3, rtol=2e-3), "f32 path mismatch"
    # bf16 operands compound the DFT-fold dynamic range with bf16's 8-bit mantissa;
    # loose tolerance is expected and documented.
    assert np.allclose(np.asarray(out_bf16, dtype=np.float64), ref,
                       atol=2e-1, rtol=2e-1), "bf16 path mismatch"

    print("KERNEL_OK")
</pallas_src>

<mosaic_0001>
module attributes {stable_mosaic.version = 11 : i64} {
  func.func @_bnn_kernel(%arg0: i32, %arg1: memref<16x256xf32, #tpu.memory_space<vmem>>, %arg2: memref<32x16xf32, #tpu.memory_space<vmem>>, %arg3: memref<32x1xf32, #tpu.memory_space<vmem>>, %arg4: memref<8x32xf32, #tpu.memory_space<vmem>>, %arg5: memref<8x1xf32, #tpu.memory_space<vmem>>, %arg6: memref<8x256xf32, #tpu.memory_space<vmem>>, %arg7: memref<8x256xf32, #tpu.memory_space<vmem>>) attributes {dimension_semantics = [#tpu.dimension_semantics<parallel>], iteration_bounds = array<i64: 1>, scalar_prefetch = 0 : i64, scratch_operands = 0 : i64, tpu.core_type = #tpu.core_type<tc>, window_params = [{transform_indices = @transform_0, window_bounds = array<i64: 16, 256>}, {pipeline_mode = #tpu.pipeline_mode<synchronous>, transform_indices = @transform_1, window_bounds = array<i64: 32, 16>}, {pipeline_mode = #tpu.pipeline_mode<synchronous>, transform_indices = @transform_2, window_bounds = array<i64: 32, 1>}, {pipeline_mode = #tpu.pipeline_mode<synchronous>, transform_indices = @transform_3, window_bounds = array<i64: 8, 32>}, {pipeline_mode = #tpu.pipeline_mode<synchronous>, transform_indices = @transform_4, window_bounds = array<i64: 8, 1>}, {transform_indices = @transform_5, window_bounds = array<i64: 8, 256>}, {transform_indices = @transform_6, window_bounds = array<i64: 8, 256>}]} {
    %c0 = arith.constant 0 : index
    %c0_0 = arith.constant 0 : index
    %0 = vector.load %arg2[%c0, %c0_0] : memref<32x16xf32, #tpu.memory_space<vmem>>, vector<32x16xf32>
    %c0_1 = arith.constant 0 : index
    %c0_2 = arith.constant 0 : index
    %1 = vector.load %arg1[%c0_1, %c0_2] : memref<16x256xf32, #tpu.memory_space<vmem>>, vector<16x256xf32>
    %cst = arith.constant dense<0.000000e+00> : vector<32x256xf32>
    %2 = tpu.matmul %0, %1, %cst {dimension_numbers = #tpu.dot_dimension_numbers<[1], [0], [0], [1], [0, 0, 1, 1], [], []>, precision = #tpu.contract_precision<fp32>} : vector<32x16xf32>, vector<16x256xf32>, vector<32x256xf32> -> vector<32x256xf32>
    %c0_3 = arith.constant 0 : index
    %c0_4 = arith.constant 0 : index
    %3 = vector.load %arg3[%c0_3, %c0_4] : memref<32x1xf32, #tpu.memory_space<vmem>>, vector<32x1xf32>
    %4 = vector.broadcast %3 : vector<32x1xf32> to vector<32x256xf32>
    %5 = arith.addf %2, %4 : vector<32x256xf32>
    %cst_5 = arith.constant 0.000000e+00 : f32
    %6 = vector.broadcast %cst_5 : f32 to vector<32x256xf32>
    %7 = arith.maximumf %5, %6 : vector<32x256xf32>
    %c0_6 = arith.constant 0 : index
    %c0_7 = arith.constant 0 : index
    %8 = vector.load %arg4[%c0_6, %c0_7] : memref<8x32xf32, #tpu.memory_space<vmem>>, vector<8x32xf32>
    %cst_8 = arith.constant dense<0.000000e+00> : vector<8x256xf32>
    %9 = tpu.matmul %8, %7, %cst_8 {dimension_numbers = #tpu.dot_dimension_numbers<[1], [0], [0], [1], [0, 0, 1, 1], [], []>, precision = #tpu.contract_precision<fp32>} : vector<8x32xf32>, vector<32x256xf32>, vector<8x256xf32> -> vector<8x256xf32>
    %c0_9 = arith.constant 0 : index
    %c0_10 = arith.constant 0 : index
    %10 = vector.load %arg5[%c0_9, %c0_10] : memref<8x1xf32, #tpu.memory_space<vmem>>, vector<8x1xf32>
    %11 = vector.broadcast %10 : vector<8x1xf32> to vector<8x256xf32>
    %12 = arith.addf %9, %11 : vector<8x256xf32>
    %cst_11 = arith.constant 5.000000e-01 : f32
    %13 = vector.broadcast %cst_11 : f32 to vector<8x256xf32>
    %14 = arith.mulf %13, %12 : vector<8x256xf32>
    %15 = math.exp %14 : vector<8x256xf32>
    %c0_12 = arith.constant 0 : index
    %c0_13 = arith.constant 0 : index
    %16 = vector.load %arg6[%c0_12, %c0_13] : memref<8x256xf32, #tpu.memory_space<vmem>>, vector<8x256xf32>
    %17 = arith.mulf %15, %16 : vector<8x256xf32>
    %18 = arith.addf %12, %17 : vector<8x256xf32>
    %c0_14 = arith.constant 0 : index
    %c0_15 = arith.constant 0 : index
    %19 = vector.load %arg7[%c0_14, %c0_15] : memref<8x256xf32, #tpu.memory_space<vmem>>, vector<8x256xf32>
    tpu.vector_store %arg7[%c0_14, %c0_15], %18 {strides = array<i32>} : memref<8x256xf32, #tpu.memory_space<vmem>>, vector<8x256xf32>,
    return
  }
  func.func @transform_0(%arg0: i32) -> (i32, i32) {
    %c0_i32 = arith.constant 0 : i32
    %c0_i32_0 = arith.constant 0 : i32
    return %c0_i32, %arg0 : i32, i32
  }
  func.func @transform_1(%arg0: i32) -> (i32, i32) {
    %c0_i32 = arith.constant 0 : i32
    %c0_i32_0 = arith.constant 0 : i32
    %c0_i32_1 = arith.constant 0 : i32
    return %c0_i32, %c0_i32_0 : i32, i32
  }
  func.func @transform_2(%arg0: i32) -> (i32, i32) {
    %c0_i32 = arith.constant 0 : i32
    %c0_i32_0 = arith.constant 0 : i32
    %c0_i32_1 = arith.constant 0 : i32
    return %c0_i32, %c0_i32_0 : i32, i32
  }
  func.func @transform_3(%arg0: i32) -> (i32, i32) {
    %c0_i32 = arith.constant 0 : i32
    %c0_i32_0 = arith.constant 0 : i32
    %c0_i32_1 = arith.constant 0 : i32
    return %c0_i32, %c0_i32_0 : i32, i32
  }
  func.func @transform_4(%arg0: i32) -> (i32, i32) {
    %c0_i32 = arith.constant 0 : i32
    %c0_i32_0 = arith.constant 0 : i32
    %c0_i32_1 = arith.constant 0 : i32
    return %c0_i32, %c0_i32_0 : i32, i32
  }
  func.func @transform_5(%arg0: i32) -> (i32, i32) {
    %c0_i32 = arith.constant 0 : i32
    %c0_i32_0 = arith.constant 0 : i32
    return %c0_i32, %arg0 : i32, i32
  }
  func.func @transform_6(%arg0: i32) -> (i32, i32) {
    %c0_i32 = arith.constant 0 : i32
    %c0_i32_0 = arith.constant 0 : i32
    return %c0_i32, %arg0 : i32, i32
  }
}

</mosaic_0001>

<llo_original>
// kernel: bnn_forward.1
$region0: #{bnn_forward.1}
  #allocation0 [shape = 'u32[]', space=smem, size = 0x4, offset = 0x4, fixed_abs, tag = 'smem constant byte address 0x4 - core index']
  #allocation1 [shape = 'u32[72,128]{1,0:T(1,128)}', space=vmem, size = 0x9000, scoped, tag = 'internal scratch']
  %s0 = inlined_call_operand.vmem [shape: f32[16,256], index: 0, kind: input, shape index: {}]
  %s1 = inlined_call_operand.vmem [shape: f32[32,16], index: 1, kind: input, shape index: {}]
  %s2 = inlined_call_operand.vmem [shape: f32[32,1], index: 2, kind: input, shape index: {}]
  %s3 = inlined_call_operand.vmem [shape: f32[8,32], index: 3, kind: input, shape index: {}]
  %s4 = inlined_call_operand.vmem [shape: f32[8,1], index: 4, kind: input, shape index: {}]
  %s5 = inlined_call_operand.vmem [shape: f32[8,256], index: 5, kind: input, shape index: {}]
  %s6 = inlined_call_operand.hbm [shape: f32[8,256], index: 6, kind: output, shape index: {}]
  %s7 = sld [smem:[#allocation0]]
  $region34: #{bnn_forward.1} parent=0
    _
  %s9 = ssub.s32 1, %s7
  %s10 = scalar_select 0, %s9, %s7
  $region1: #{bnn_forward.1} parent=0
    #allocation2 [shape = 'u8[8192]{0}', space=vmem, size = 0x2000, scoped, tag = 'output window, operand 0, single buffered']
    #allocation3 [shape = 's32[1]{0}', space=sflag, size = 0x4, scoped, tag = 'scoped memory for bnn_forward.1']
    %11 = vsyncpa [#allocation3], 0
    // Predicated region
    $region2: #{bnn_forward.1} parent=1 // pred_check
      _
    $region3: #{bnn_forward.1} parent=1 // pred_check_branch
      %13 = sbr.rel (0) target = $region5
    $region4: #{bnn_forward.1} parent=1 // pred_region
      _
    $region5: #{bnn_forward.1} parent=1 // pred_fallthru
      _
    // Predicated region
    $region6: #{bnn_forward.1} parent=1 // pred_check
      _
    $region7: #{bnn_forward.1} parent=1 // pred_check_branch
      %15 = sbr.rel (0) target = $region9
    $region8: #{bnn_forward.1} parent=1 // pred_region
      _
    $region9: #{bnn_forward.1} parent=1 // pred_fallthru
      _
    // Predicated region
    $region10: #{bnn_forward.1} parent=1 // pred_check
      _
    $region11: #{bnn_forward.1} parent=1 // pred_check_branch
      %17 = sbr.rel (0) target = $region13
    $region12: #{bnn_forward.1} parent=1 // pred_region
      _
    $region13: #{bnn_forward.1} parent=1 // pred_fallthru
      _
    // Predicated region
    $region14: #{bnn_forward.1} parent=1 // pred_check
      _
    $region15: #{bnn_forward.1} parent=1 // pred_check_branch
      %19 = sbr.rel (0) target = $region17
    $region16: #{bnn_forward.1} parent=1 // pred_region
      _
    $region17: #{bnn_forward.1} parent=1 // pred_fallthru
      _
    // Predicated region
    $region18: #{bnn_forward.1} parent=1 // pred_check
      _
    $region19: #{bnn_forward.1} parent=1 // pred_check_branch
      %21 = sbr.rel (0) target = $region21
    $region20: #{bnn_forward.1} parent=1 // pred_region
      _
    $region21: #{bnn_forward.1} parent=1 // pred_fallthru
      _
    // Predicated region
    $region22: #{bnn_forward.1} parent=1 // pred_check
      _
    $region23: #{bnn_forward.1} parent=1 // pred_check_branch
      %23 = sbr.rel (0) target = $region25
    $region24: #{bnn_forward.1} parent=1 // pred_region
      _
    $region25: #{bnn_forward.1} parent=1 // pred_fallthru
      _
    %v24 = vld [vmem:[%s1] sm:$0xff]
    %v25 = vld [vmem:[%s1 + $0x8] sm:$0xff]
    %v26 = vld [vmem:[%s1 + $0x10] sm:$0xff]
    %v27 = vld [vmem:[%s1 + $0x18] sm:$0xff]
    %v28 = vld [vmem:[%s0] sm:$0xff]
    %v29 = vld [vmem:[%s0 + $0x8] sm:$0xff]
    %v30 = vld [vmem:[%s0 + $0x10] sm:$0xff]
    %v31 = vld [vmem:[%s0 + $0x18] sm:$0xff]
    %v32 = vld [vmem:[%s2] sm:$0xff]
    %v33 = vld [vmem:[%s2 + $0x8] sm:$0xff]
    %v34 = vld [vmem:[%s2 + $0x10] sm:$0xff]
    %v35 = vld [vmem:[%s2 + $0x18] sm:$0xff]
    %37 = vset.pattern.permute.xlu0 0
    %38 = vperm.xlu0 %37, %v32
    %v39 = vpop.permute.xlu0 %38
    %42 = vset.pattern.permute.xlu0 0
    %43 = vperm.xlu0 %42, %v33
    %v44 = vpop.permute.xlu0 %43
    %47 = vset.pattern.permute.xlu0 0
    %48 = vperm.xlu0 %47, %v34
    %v49 = vpop.permute.xlu0 %48
    %52 = vset.pattern.permute.xlu0 0
    %53 = vperm.xlu0 %52, %v35
    %v54 = vpop.permute.xlu0 %53
    %vm56 = vcmask 130048
    %v58 = vsel %vm56, %v24, 0
    %v61 = vsel %vm56, %v25, 0
    %v64 = vsel %vm56, %v26, 0
    %v67 = vsel %vm56, %v27, 0
    %69 = vmatpush.msra.mxu0 0.0
    %70 = vmatpush.msra.mxu0 0.0
    %71 = vmatpush.msra.mxu0 0.0
    %72 = vmatpush.msra.mxu0 0.0
    %73 = vmatpush.msra.mxu0 0.0
    %74 = vmatpush.msra.mxu0 0.0
    %75 = vmatpush.msra.mxu0 0.0
    %76 = vmatpush.msra.mxu0 0.0
    %77 = vmatpush.msra.mxu0 0.0
    %78 = vmatpush.msra.mxu0 0.0
    %79 = vmatpush.msra.mxu0 0.0
    %80 = vmatpush.msra.mxu0 0.0
    %81 = vmatpush.msra.mxu0 0.0
    %82 = vmatpush.msra.mxu0 0.0
    %v83 = vand.u32 %v30, 4294901760
    %84 = vmatpush.msra.mxu0 %v83
    %v85 = vand.u32 %v28, 4294901760
    %86 = vmatpush.msra.mxu0 %v85
    %v87 = vand.u32 %v58, 4294901760
    %v88 = vsub.f32 %v58, %v87
    %v89 = vand.u32 %v88, 4294901760
    %v90 = vsub.f32 %v88, %v89
    %v91 = vand.u32 %v90, 4294901760
    %92 = vmatmul.f32.gmra.mxu0 %v91
    %v93 = vpop.f32.mrf.mxu0
    %v94 = vadd.f32 %v39, %v93
    %v95 = vand.u32 %v61, 4294901760
    %v96 = vsub.f32 %v61, %v95
    %v97 = vand.u32 %v96, 4294901760
    %v98 = vsub.f32 %v96, %v97
    %v99 = vand.u32 %v98, 4294901760
    %100 = vmatmul.f32.gmra.mxu0 %v99
    %v101 = vpop.f32.mrf.mxu0
    %v102 = vadd.f32 %v44, %v101
    %v103 = vand.u32 %v64, 4294901760
    %v104 = vsub.f32 %v64, %v103
    %v105 = vand.u32 %v104, 4294901760
    %v106 = vsub.f32 %v104, %v105
    %v107 = vand.u32 %v106, 4294901760
    %108 = vmatmul.f32.gmra.mxu0 %v107
    %v109 = vpop.f32.mrf.mxu0
    %v110 = vadd.f32 %v49, %v109
    %v111 = vand.u32 %v67, 4294901760
    %v112 = vsub.f32 %v67, %v111
    %v113 = vand.u32 %v112, 4294901760
    %v114 = vsub.f32 %v112, %v113
    %v115 = vand.u32 %v114, 4294901760
    %116 = vmatmul.f32.gmra.mxu0 %v115
    %v117 = vpop.f32.mrf.mxu0
    %v118 = vadd.f32 %v54, %v117
    %119 = vdwg.mxu0
    %120 = vmatpush.msra.mxu0 0.0
    %121 = vmatpush.msra.mxu0 0.0
    %122 = vmatpush.msra.mxu0 0.0
    %123 = vmatpush.msra.mxu0 0.0
    %124 = vmatpush.msra.mxu0 0.0
    %125 = vmatpush.msra.mxu0 0.0
    %126 = vmatpush.msra.mxu0 0.0
    %127 = vmatpush.msra.mxu0 0.0
    %128 = vmatpush.msra.mxu0 0.0
    %129 = vmatpush.msra.mxu0 0.0
    %130 = vmatpush.msra.mxu0 0.0
    %131 = vmatpush.msra.mxu0 0.0
    %132 = vmatpush.msra.mxu0 0.0
    %133 = vmatpush.msra.mxu0 0.0
    %v134 = vand.u32 %v30, 4294901760
    %v135 = vsub.f32 %v30, %v134
    %v136 = vand.u32 %v135, 4294901760
    %v137 = vsub.f32 %v135, %v136
    %v138 = vand.u32 %v137, 4294901760
    %139 = vmatpush.msra.mxu0 %v138
    %v140 = vand.u32 %v28, 4294901760
    %v141 = vsub.f32 %v28, %v140
    %v142 = vand.u32 %v141, 4294901760
    %v143 = vsub.f32 %v141, %v142
    %v144 = vand.u32 %v143, 4294901760
    %145 = vmatpush.msra.mxu0 %v144
    %v146 = vand.u32 %v58, 4294901760
    %147 = vmatmul.f32.gmra.mxu0 %v146
    %v148 = vpop.f32.mrf.mxu0
    %v149 = vadd.f32 %v94, %v148
    %v150 = vand.u32 %v61, 4294901760
    %151 = vmatmul.f32.gmra.mxu0 %v150
    %v152 = vpop.f32.mrf.mxu0
    %v153 = vadd.f32 %v102, %v152
    %v154 = vand.u32 %v64, 4294901760
    %155 = vmatmul.f32.gmra.mxu0 %v154
    %v156 = vpop.f32.mrf.mxu0
    %v157 = vadd.f32 %v110, %v156
    %v158 = vand.u32 %v67, 4294901760
    %159 = vmatmul.f32.gmra.mxu0 %v158
    %v160 = vpop.f32.mrf.mxu0
    %v161 = vadd.f32 %v118, %v160
    %162 = vdwg.mxu0
    %163 = vmatpush.msra.mxu0 0.0
    %164 = vmatpush.msra.mxu0 0.0
    %165 = vmatpush.msra.mxu0 0.0
    %166 = vmatpush.msra.mxu0 0.0
    %167 = vmatpush.msra.mxu0 0.0
    %168 = vmatpush.msra.mxu0 0.0
    %169 = vmatpush.msra.mxu0 0.0
    %170 = vmatpush.msra.mxu0 0.0
    %171 = vmatpush.msra.mxu0 0.0
    %172 = vmatpush.msra.mxu0 0.0
    %173 = vmatpush.msra.mxu0 0.0
    %174 = vmatpush.msra.mxu0 0.0
    %175 = vmatpush.msra.mxu0 0.0
    %176 = vmatpush.msra.mxu0 0.0
    %v177 = vand.u32 %v30, 4294901760
    %v178 = vsub.f32 %v30, %v177
    %179 = vmatpush.msra.mxu0 %v178
    %v180 = vand.u32 %v28, 4294901760
    %v181 = vsub.f32 %v28, %v180
    %182 = vmatpush.msra.mxu0 %v181
    %v183 = vand.u32 %v58, 4294901760
    %v184 = vsub.f32 %v58, %v183
    %185 = vmatmul.f32.gmra.mxu0 %v184
    %v186 = vpop.f32.mrf.mxu0
    %v187 = vadd.f32 %v149, %v186
    %v188 = vand.u32 %v61, 4294901760
    %v189 = vsub.f32 %v61, %v188
    %190 = vmatmul.f32.gmra.mxu0 %v189
    %v191 = vpop.f32.mrf.mxu0
    %v192 = vadd.f32 %v153, %v191
    %v193 = vand.u32 %v64, 4294901760
    %v194 = vsub.f32 %v64, %v193
    %195 = vmatmul.f32.gmra.mxu0 %v194
    %v196 = vpop.f32.mrf.mxu0
    %v197 = vadd.f32 %v157, %v196
    %v198 = vand.u32 %v67, 4294901760
    %v199 = vsub.f32 %v67, %v198
    %200 = vmatmul.f32.gmra.mxu0 %v199
    %v201 = vpop.f32.mrf.mxu0
    %v202 = vadd.f32 %v161, %v201
    %203 = vdwg.mxu0
    %204 = vmatpush.msra.mxu0 0.0
    %205 = vmatpush.msra.mxu0 0.0
    %206 = vmatpush.msra.mxu0 0.0
    %207 = vmatpush.msra.mxu0 0.0
    %208 = vmatpush.msra.mxu0 0.0
    %209 = vmatpush.msra.mxu0 0.0
    %210 = vmatpush.msra.mxu0 0.0
    %211 = vmatpush.msra.mxu0 0.0
    %212 = vmatpush.msra.mxu0 0.0
    %213 = vmatpush.msra.mxu0 0.0
    %214 = vmatpush.msra.mxu0 0.0
    %215 = vmatpush.msra.mxu0 0.0
    %216 = vmatpush.msra.mxu0 0.0
    %217 = vmatpush.msra.mxu0 0.0
    %v218 = vand.u32 %v30, 4294901760
    %219 = vmatpush.msra.mxu0 %v218
    %v220 = vand.u32 %v28, 4294901760
    %221 = vmatpush.msra.mxu0 %v220
    %v222 = vand.u32 %v58, 4294901760
    %v223 = vsub.f32 %v58, %v222
    %v224 = vand.u32 %v223, 4294901760
    %225 = vmatmul.f32.gmra.mxu0 %v224
    %v226 = vpop.f32.mrf.mxu0
    %v227 = vadd.f32 %v187, %v226
    %v228 = vand.u32 %v61, 4294901760
    %v229 = vsub.f32 %v61, %v228
    %v230 = vand.u32 %v229, 4294901760
    %231 = vmatmul.f32.gmra.mxu0 %v230
    %v232 = vpop.f32.mrf.mxu0
    %v233 = vadd.f32 %v192, %v232
    %v234 = vand.u32 %v64, 4294901760
    %v235 = vsub.f32 %v64, %v234
    %v236 = vand.u32 %v235, 4294901760
    %237 = vmatmul.f32.gmra.mxu0 %v236
    %v238 = vpop.f32.mrf.mxu0
    %v239 = vadd.f32 %v197, %v238
    %v240 = vand.u32 %v67, 4294901760
    %v241 = vsub.f32 %v67, %v240
    %v242 = vand.u32 %v241, 4294901760
    %243 = vmatmul.f32.gmra.mxu0 %v242
    %v244 = vpop.f32.mrf.mxu0
    %v245 = vadd.f32 %v202, %v244
    %246 = vdwg.mxu0
    %247 = vmatpush.msra.mxu0 0.0
    %248 = vmatpush.msra.mxu0 0.0
    %249 = vmatpush.msra.mxu0 0.0
    %250 = vmatpush.msra.mxu0 0.0
    %251 = vmatpush.msra.mxu0 0.0
    %252 = vmatpush.msra.mxu0 0.0
    %253 = vmatpush.msra.mxu0 0.0
    %254 = vmatpush.msra.mxu0 0.0
    %255 = vmatpush.msra.mxu0 0.0
    %256 = vmatpush.msra.mxu0 0.0
    %257 = vmatpush.msra.mxu0 0.0
    %258 = vmatpush.msra.mxu0 0.0
    %259 = vmatpush.msra.mxu0 0.0
    %260 = vmatpush.msra.mxu0 0.0
    %v261 = vand.u32 %v30, 4294901760
    %v262 = vsub.f32 %v30, %v261
    %v263 = vand.u32 %v262, 4294901760
    %264 = vmatpush.msra.mxu0 %v263
    %v265 = vand.u32 %v28, 4294901760
    %v266 = vsub.f32 %v28, %v265
    %v267 = vand.u32 %v266, 4294901760
    %268 = vmatpush.msra.mxu0 %v267
    %v269 = vand.u32 %v58, 4294901760
    %270 = vmatmul.f32.gmra.mxu0 %v269
    %v271 = vpop.f32.mrf.mxu0
    %v272 = vadd.f32 %v227, %v271
    %v273 = vand.u32 %v61, 4294901760
    %274 = vmatmul.f32.gmra.mxu0 %v273
    %v275 = vpop.f32.mrf.mxu0
    %v276 = vadd.f32 %v233, %v275
    %v277 = vand.u32 %v64, 4294901760
    %278 = vmatmul.f32.gmra.mxu0 %v277
    %v279 = vpop.f32.mrf.mxu0
    %v280 = vadd.f32 %v239, %v279
    %v281 = vand.u32 %v67, 4294901760
    %282 = vmatmul.f32.gmra.mxu0 %v281
    %v283 = vpop.f32.mrf.mxu0
    %v284 = vadd.f32 %v245, %v283
    %285 = vdwg.mxu0
    %286 = vmatpush.msra.mxu0 0.0
    %287 = vmatpush.msra.mxu0 0.0
    %288 = vmatpush.msra.mxu0 0.0
    %289 = vmatpush.msra.mxu0 0.0
    %290 = vmatpush.msra.mxu0 0.0
    %291 = vmatpush.msra.mxu0 0.0
    %292 = vmatpush.msra.mxu0 0.0
    %293 = vmatpush.msra.mxu0 0.0
    %294 = vmatpush.msra.mxu0 0.0
    %295 = vmatpush.msra.mxu0 0.0
    %296 = vmatpush.msra.mxu0 0.0
    %297 = vmatpush.msra.mxu0 0.0
    %298 = vmatpush.msra.mxu0 0.0
    %299 = vmatpush.msra.mxu0 0.0
    %v300 = vand.u32 %v30, 4294901760
    %301 = vmatpush.msra.mxu0 %v300
    %v302 = vand.u32 %v28, 4294901760
    %303 = vmatpush.msra.mxu0 %v302
    %v304 = vand.u32 %v58, 4294901760
    %305 = vmatmul.f32.gmra.mxu0 %v304
    %v306 = vpop.f32.mrf.mxu0
    %v307 = vadd.f32 %v272, %v306
    %v308 = vand.u32 %v61, 4294901760
    %309 = vmatmul.f32.gmra.mxu0 %v308
    %v310 = vpop.f32.mrf.mxu0
    %v311 = vadd.f32 %v276, %v310
    %v312 = vand.u32 %v64, 4294901760
    %313 = vmatmul.f32.gmra.mxu0 %v312
    %v314 = vpop.f32.mrf.mxu0
    %v315 = vadd.f32 %v280, %v314
    %v316 = vand.u32 %v67, 4294901760
    %317 = vmatmul.f32.gmra.mxu0 %v316
    %v318 = vpop.f32.mrf.mxu0
    %v319 = vadd.f32 %v284, %v318
    %320 = vdwg.mxu0
    %321 = vmatpush.msra.mxu0 0.0
    %322 = vmatpush.msra.mxu0 0.0
    %323 = vmatpush.msra.mxu0 0.0
    %324 = vmatpush.msra.mxu0 0.0
    %325 = vmatpush.msra.mxu0 0.0
    %326 = vmatpush.msra.mxu0 0.0
    %327 = vmatpush.msra.mxu0 0.0
    %328 = vmatpush.msra.mxu0 0.0
    %329 = vmatpush.msra.mxu0 0.0
    %330 = vmatpush.msra.mxu0 0.0
    %331 = vmatpush.msra.mxu0 0.0
    %332 = vmatpush.msra.mxu0 0.0
    %333 = vmatpush.msra.mxu0 0.0
    %334 = vmatpush.msra.mxu0 0.0
    %v335 = vand.u32 %v31, 4294901760
    %336 = vmatpush.msra.mxu0 %v335
    %v337 = vand.u32 %v29, 4294901760
    %338 = vmatpush.msra.mxu0 %v337
    %v339 = vand.u32 %v58, 4294901760
    %v340 = vsub.f32 %v58, %v339
    %v341 = vand.u32 %v340, 4294901760
    %v342 = vsub.f32 %v340, %v341
    %v343 = vand.u32 %v342, 4294901760
    %344 = vmatmul.f32.gmra.mxu0 %v343
    %v345 = vpop.f32.mrf.mxu0
    %v346 = vadd.f32 %v39, %v345
    %v347 = vand.u32 %v61, 4294901760
    %v348 = vsub.f32 %v61, %v347
    %v349 = vand.u32 %v348, 4294901760
    %v350 = vsub.f32 %v348, %v349
    %v351 = vand.u32 %v350, 4294901760
    %352 = vmatmul.f32.gmra.mxu0 %v351
    %v353 = vpop.f32.mrf.mxu0
    %v354 = vadd.f32 %v44, %v353
    %v355 = vand.u32 %v64, 4294901760
    %v356 = vsub.f32 %v64, %v355
    %v357 = vand.u32 %v356, 4294901760
    %v358 = vsub.f32 %v356, %v357
    %v359 = vand.u32 %v358, 4294901760
    %360 = vmatmul.f32.gmra.mxu0 %v359
    %v361 = vpop.f32.mrf.mxu0
    %v362 = vadd.f32 %v49, %v361
    %v363 = vand.u32 %v67, 4294901760
    %v364 = vsub.f32 %v67, %v363
    %v365 = vand.u32 %v364, 4294901760
    %v366 = vsub.f32 %v364, %v365
    %v367 = vand.u32 %v366, 4294901760
    %368 = vmatmul.f32.gmra.mxu0 %v367
    %v369 = vpop.f32.mrf.mxu0
    %v370 = vadd.f32 %v54, %v369
    %371 = vdwg.mxu0
    %372 = vmatpush.msra.mxu0 0.0
    %373 = vmatpush.msra.mxu0 0.0
    %374 = vmatpush.msra.mxu0 0.0
    %375 = vmatpush.msra.mxu0 0.0
    %376 = vmatpush.msra.mxu0 0.0
    %377 = vmatpush.msra.mxu0 0.0
    %378 = vmatpush.msra.mxu0 0.0
    %379 = vmatpush.msra.mxu0 0.0
    %380 = vmatpush.msra.mxu0 0.0
    %381 = vmatpush.msra.mxu0 0.0
    %382 = vmatpush.msra.mxu0 0.0
    %383 = vmatpush.msra.mxu0 0.0
    %384 = vmatpush.msra.mxu0 0.0
    %385 = vmatpush.msra.mxu0 0.0
    %v386 = vand.u32 %v31, 4294901760
    %v387 = vsub.f32 %v31, %v386
    %v388 = vand.u32 %v387, 4294901760
    %v389 = vsub.f32 %v387, %v388
    %v390 = vand.u32 %v389, 4294901760
    %391 = vmatpush.msra.mxu0 %v390
    %v392 = vand.u32 %v29, 4294901760
    %v393 = vsub.f32 %v29, %v392
    %v394 = vand.u32 %v393, 4294901760
    %v395 = vsub.f32 %v393, %v394
    %v396 = vand.u32 %v395, 4294901760
    %397 = vmatpush.msra.mxu0 %v396
    %v398 = vand.u32 %v58, 4294901760
    %399 = vmatmul.f32.gmra.mxu0 %v398
    %v400 = vpop.f32.mrf.mxu0
    %v401 = vadd.f32 %v346, %v400
    %v402 = vand.u32 %v61, 4294901760
    %403 = vmatmul.f32.gmra.mxu0 %v402
    %v404 = vpop.f32.mrf.mxu0
    %v405 = vadd.f32 %v354, %v404
    %v406 = vand.u32 %v64, 4294901760
    %407 = vmatmul.f32.gmra.mxu0 %v406
    %v408 = vpop.f32.mrf.mxu0
    %v409 = vadd.f32 %v362, %v408
    %v410 = vand.u32 %v67, 4294901760
    %411 = vmatmul.f32.gmra.mxu0 %v410
    %v412 = vpop.f32.mrf.mxu0
    %v413 = vadd.f32 %v370, %v412
    %414 = vdwg.mxu0
    %415 = vmatpush.msra.mxu0 0.0
    %416 = vmatpush.msra.mxu0 0.0
    %417 = vmatpush.msra.mxu0 0.0
    %418 = vmatpush.msra.mxu0 0.0
    %419 = vmatpush.msra.mxu0 0.0
    %420 = vmatpush.msra.mxu0 0.0
    %421 = vmatpush.msra.mxu0 0.0
    %422 = vmatpush.msra.mxu0 0.0
    %423 = vmatpush.msra.mxu0 0.0
    %424 = vmatpush.msra.mxu0 0.0
    %425 = vmatpush.msra.mxu0 0.0
    %426 = vmatpush.msra.mxu0 0.0
    %427 = vmatpush.msra.mxu0 0.0
    %428 = vmatpush.msra.mxu0 0.0
    %v429 = vand.u32 %v31, 4294901760
    %v430 = vsub.f32 %v31, %v429
    %431 = vmatpush.msra.mxu0 %v430
    %v432 = vand.u32 %v29, 4294901760
    %v433 = vsub.f32 %v29, %v432
    %434 = vmatpush.msra.mxu0 %v433
    %v435 = vand.u32 %v58, 4294901760
    %v436 = vsub.f32 %v58, %v435
    %437 = vmatmul.f32.gmra.mxu0 %v436
    %v438 = vpop.f32.mrf.mxu0
    %v439 = vadd.f32 %v401, %v438
    %v440 = vand.u32 %v61, 4294901760
    %v441 = vsub.f32 %v61, %v440
    %442 = vmatmul.f32.gmra.mxu0 %v441
    %v443 = vpop.f32.mrf.mxu0
    %v444 = vadd.f32 %v405, %v443
    %v445 = vand.u32 %v64, 4294901760
    %v446 = vsub.f32 %v64, %v445
    %447 = vmatmul.f32.gmra.mxu0 %v446
    %v448 = vpop.f32.mrf.mxu0
    %v449 = vadd.f32 %v409, %v448
    %v450 = vand.u32 %v67, 4294901760
    %v451 = vsub.f32 %v67, %v450
    %452 = vmatmul.f32.gmra.mxu0 %v451
    %v453 = vpop.f32.mrf.mxu0
    %v454 = vadd.f32 %v413, %v453
    %455 = vdwg.mxu0
    %456 = vmatpush.msra.mxu0 0.0
    %457 = vmatpush.msra.mxu0 0.0
    %458 = vmatpush.msra.mxu0 0.0
    %459 = vmatpush.msra.mxu0 0.0
    %460 = vmatpush.msra.mxu0 0.0
    %461 = vmatpush.msra.mxu0 0.0
    %462 = vmatpush.msra.mxu0 0.0
    %463 = vmatpush.msra.mxu0 0.0
    %464 = vmatpush.msra.mxu0 0.0
    %465 = vmatpush.msra.mxu0 0.0
    %466 = vmatpush.msra.mxu0 0.0
    %467 = vmatpush.msra.mxu0 0.0
    %468 = vmatpush.msra.mxu0 0.0
    %469 = vmatpush.msra.mxu0 0.0
    %v470 = vand.u32 %v31, 4294901760
    %471 = vmatpush.msra.mxu0 %v470
    %v472 = vand.u32 %v29, 4294901760
    %473 = vmatpush.msra.mxu0 %v472
    %v474 = vand.u32 %v58, 4294901760
    %v475 = vsub.f32 %v58, %v474
    %v476 = vand.u32 %v475, 4294901760
    %477 = vmatmul.f32.gmra.mxu0 %v476
    %v478 = vpop.f32.mrf.mxu0
    %v479 = vadd.f32 %v439, %v478
    %v480 = vand.u32 %v61, 4294901760
    %v481 = vsub.f32 %v61, %v480
    %v482 = vand.u32 %v481, 4294901760
    %483 = vmatmul.f32.gmra.mxu0 %v482
    %v484 = vpop.f32.mrf.mxu0
    %v485 = vadd.f32 %v444, %v484
    %v486 = vand.u32 %v64, 4294901760
    %v487 = vsub.f32 %v64, %v486
    %v488 = vand.u32 %v487, 4294901760
    %489 = vmatmul.f32.gmra.mxu0 %v488
    %v490 = vpop.f32.mrf.mxu0
    %v491 = vadd.f32 %v449, %v490
    %v492 = vand.u32 %v67, 4294901760
    %v493 = vsub.f32 %v67, %v492
    %v494 = vand.u32 %v493, 4294901760
    %495 = vmatmul.f32.gmra.mxu0 %v494
    %v496 = vpop.f32.mrf.mxu0
    %v497 = vadd.f32 %v454, %v496
    %498 = vdwg.mxu0
    %499 = vmatpush.msra.mxu0 0.0
    %500 = vmatpush.msra.mxu0 0.0
    %501 = vmatpush.msra.mxu0 0.0
    %502 = vmatpush.msra.mxu0 0.0
    %503 = vmatpush.msra.mxu0 0.0
    %504 = vmatpush.msra.mxu0 0.0
    %505 = vmatpush.msra.mxu0 0.0
    %506 = vmatpush.msra.mxu0 0.0
    %507 = vmatpush.msra.mxu0 0.0
    %508 = vmatpush.msra.mxu0 0.0
    %509 = vmatpush.msra.mxu0 0.0
    %510 = vmatpush.msra.mxu0 0.0
    %511 = vmatpush.msra.mxu0 0.0
    %512 = vmatpush.msra.mxu0 0.0
    %v513 = vand.u32 %v31, 4294901760
    %v514 = vsub.f32 %v31, %v513
    %v515 = vand.u32 %v514, 4294901760
    %516 = vmatpush.msra.mxu0 %v515
    %v517 = vand.u32 %v29, 4294901760
    %v518 = vsub.f32 %v29, %v517
    %v519 = vand.u32 %v518, 4294901760
    %520 = vmatpush.msra.mxu0 %v519
    %v521 = vand.u32 %v58, 4294901760
    %522 = vmatmul.f32.gmra.mxu0 %v521
    %v523 = vpop.f32.mrf.mxu0
    %v524 = vadd.f32 %v479, %v523
    %v525 = vand.u32 %v61, 4294901760
    %526 = vmatmul.f32.gmra.mxu0 %v525
    %v527 = vpop.f32.mrf.mxu0
    %v528 = vadd.f32 %v485, %v527
    %v529 = vand.u32 %v64, 4294901760
    %530 = vmatmul.f32.gmra.mxu0 %v529
    %v531 = vpop.f32.mrf.mxu0
    %v532 = vadd.f32 %v491, %v531
    %v533 = vand.u32 %v67, 4294901760
    %534 = vmatmul.f32.gmra.mxu0 %v533
    %v535 = vpop.f32.mrf.mxu0
    %v536 = vadd.f32 %v497, %v535
    %537 = vdwg.mxu0
    %538 = vmatpush.msra.mxu0 0.0
    %539 = vmatpush.msra.mxu0 0.0
    %540 = vmatpush.msra.mxu0 0.0
    %541 = vmatpush.msra.mxu0 0.0
    %542 = vmatpush.msra.mxu0 0.0
    %543 = vmatpush.msra.mxu0 0.0
    %544 = vmatpush.msra.mxu0 0.0
    %545 = vmatpush.msra.mxu0 0.0
    %546 = vmatpush.msra.mxu0 0.0
    %547 = vmatpush.msra.mxu0 0.0
    %548 = vmatpush.msra.mxu0 0.0
    %549 = vmatpush.msra.mxu0 0.0
    %550 = vmatpush.msra.mxu0 0.0
    %551 = vmatpush.msra.mxu0 0.0
    %v552 = vand.u32 %v31, 4294901760
    %553 = vmatpush.msra.mxu0 %v552
    %v554 = vand.u32 %v29, 4294901760
    %555 = vmatpush.msra.mxu0 %v554
    %v556 = vand.u32 %v58, 4294901760
    %557 = vmatmul.f32.gmra.mxu0 %v556
    %v558 = vpop.f32.mrf.mxu0
    %v559 = vadd.f32 %v524, %v558
    %v560 = vand.u32 %v61, 4294901760
    %561 = vmatmul.f32.gmra.mxu0 %v560
    %v562 = vpop.f32.mrf.mxu0
    %v563 = vadd.f32 %v528, %v562
    %v564 = vand.u32 %v64, 4294901760
    %565 = vmatmul.f32.gmra.mxu0 %v564
    %v566 = vpop.f32.mrf.mxu0
    %v567 = vadd.f32 %v532, %v566
    %v568 = vand.u32 %v67, 4294901760
    %569 = vmatmul.f32.gmra.mxu0 %v568
    %v570 = vpop.f32.mrf.mxu0
    %v571 = vadd.f32 %v536, %v570
    %572 = vdwg.mxu0
    %v573 = vmax.f32 %v307, 0.0
    %v574 = vmax.f32 %v559, 0.0
    %v575 = vmax.f32 %v311, 0.0
    %v576 = vmax.f32 %v563, 0.0
    %v577 = vmax.f32 %v315, 0.0
    %v578 = vmax.f32 %v567, 0.0
    %v579 = vmax.f32 %v319, 0.0
    %v580 = vmax.f32 %v571, 0.0
    %v581 = vld [vmem:[%s3] sm:$0xff]
    %v582 = vld [vmem:[%s4] sm:$0xff]
    %584 = vset.pattern.permute.xlu0 0
    %585 = vperm.xlu0 %584, %v582
    %v586 = vpop.permute.xlu0 %585
    %vm588 = vcmask 261120
    %v590 = vsel %vm588, %v581, 0
    %592 = vmatpush.msra.mxu0 0.0
    %593 = vmatpush.msra.mxu0 0.0
    %594 = vmatpush.msra.mxu0 0.0
    %595 = vmatpush.msra.mxu0 0.0
    %596 = vmatpush.msra.mxu0 0.0
    %597 = vmatpush.msra.mxu0 0.0
    %598 = vmatpush.msra.mxu0 0.0
    %599 = vmatpush.msra.mxu0 0.0
    %600 = vmatpush.msra.mxu0 0.0
    %601 = vmatpush.msra.mxu0 0.0
    %602 = vmatpush.msra.mxu0 0.0
    %603 = vmatpush.msra.mxu0 0.0
    %v604 = vand.u32 %v579, 4294901760
    %605 = vmatpush.msra.mxu0 %v604
    %v606 = vand.u32 %v577, 4294901760
    %607 = vmatpush.msra.mxu0 %v606
    %v608 = vand.u32 %v575, 4294901760
    %609 = vmatpush.msra.mxu0 %v608
    %v610 = vand.u32 %v573, 4294901760
    %611 = vmatpush.msra.mxu0 %v610
    %v612 = vand.u32 %v590, 4294901760
    %v613 = vsub.f32 %v590, %v612
    %v614 = vand.u32 %v613, 4294901760
    %v615 = vsub.f32 %v613, %v614
    %v616 = vand.u32 %v615, 4294901760
    %617 = vmatmul.f32.gmra.mxu0 %v616
    %v618 = vpop.f32.mrf.mxu0
    %v619 = vadd.f32 %v586, %v618
    %620 = vdwg.mxu0
    %621 = vmatpush.msra.mxu0 0.0
    %622 = vmatpush.msra.mxu0 0.0
    %623 = vmatpush.msra.mxu0 0.0
    %624 = vmatpush.msra.mxu0 0.0
    %625 = vmatpush.msra.mxu0 0.0
    %626 = vmatpush.msra.mxu0 0.0
    %627 = vmatpush.msra.mxu0 0.0
    %628 = vmatpush.msra.mxu0 0.0
    %629 = vmatpush.msra.mxu0 0.0
    %630 = vmatpush.msra.mxu0 0.0
    %631 = vmatpush.msra.mxu0 0.0
    %632 = vmatpush.msra.mxu0 0.0
    %v633 = vand.u32 %v579, 4294901760
    %v634 = vsub.f32 %v579, %v633
    %v635 = vand.u32 %v634, 4294901760
    %v636 = vsub.f32 %v634, %v635
    %v637 = vand.u32 %v636, 4294901760
    %638 = vmatpush.msra.mxu0 %v637
    %v639 = vand.u32 %v577, 4294901760
    %v640 = vsub.f32 %v577, %v639
    %v641 = vand.u32 %v640, 4294901760
    %v642 = vsub.f32 %v640, %v641
    %v643 = vand.u32 %v642, 4294901760
    %644 = vmatpush.msra.mxu0 %v643
    %v645 = vand.u32 %v575, 4294901760
    %v646 = vsub.f32 %v575, %v645
    %v647 = vand.u32 %v646, 4294901760
    %v648 = vsub.f32 %v646, %v647
    %v649 = vand.u32 %v648, 4294901760
    %650 = vmatpush.msra.mxu0 %v649
    %v651 = vand.u32 %v573, 4294901760
    %v652 = vsub.f32 %v573, %v651
    %v653 = vand.u32 %v652, 4294901760
    %v654 = vsub.f32 %v652, %v653
    %v655 = vand.u32 %v654, 4294901760
    %656 = vmatpush.msra.mxu0 %v655
    %v657 = vand.u32 %v590, 4294901760
    %658 = vmatmul.f32.gmra.mxu0 %v657
    %v659 = vpop.f32.mrf.mxu0
    %v660 = vadd.f32 %v619, %v659
    %661 = vdwg.mxu0
    %662 = vmatpush.msra.mxu0 0.0
    %663 = vmatpush.msra.mxu0 0.0
    %664 = vmatpush.msra.mxu0 0.0
    %665 = vmatpush.msra.mxu0 0.0
    %666 = vmatpush.msra.mxu0 0.0
    %667 = vmatpush.msra.mxu0 0.0
    %668 = vmatpush.msra.mxu0 0.0
    %669 = vmatpush.msra.mxu0 0.0
    %670 = vmatpush.msra.mxu0 0.0
    %671 = vmatpush.msra.mxu0 0.0
    %672 = vmatpush.msra.mxu0 0.0
    %673 = vmatpush.msra.mxu0 0.0
    %v674 = vand.u32 %v579, 4294901760
    %v675 = vsub.f32 %v579, %v674
    %676 = vmatpush.msra.mxu0 %v675
    %v677 = vand.u32 %v577, 4294901760
    %v678 = vsub.f32 %v577, %v677
    %679 = vmatpush.msra.mxu0 %v678
    %v680 = vand.u32 %v575, 4294901760
    %v681 = vsub.f32 %v575, %v680
    %682 = vmatpush.msra.mxu0 %v681
    %v683 = vand.u32 %v573, 4294901760
    %v684 = vsub.f32 %v573, %v683
    %685 = vmatpush.msra.mxu0 %v684
    %v686 = vand.u32 %v590, 4294901760
    %v687 = vsub.f32 %v590, %v686
    %688 = vmatmul.f32.gmra.mxu0 %v687
    %v689 = vpop.f32.mrf.mxu0
    %v690 = vadd.f32 %v660, %v689
    %691 = vdwg.mxu0
    %692 = vmatpush.msra.mxu0 0.0
    %693 = vmatpush.msra.mxu0 0.0
    %694 = vmatpush.msra.mxu0 0.0
    %695 = vmatpush.msra.mxu0 0.0
    %696 = vmatpush.msra.mxu0 0.0
    %697 = vmatpush.msra.mxu0 0.0
    %698 = vmatpush.msra.mxu0 0.0
    %699 = vmatpush.msra.mxu0 0.0
    %700 = vmatpush.msra.mxu0 0.0
    %701 = vmatpush.msra.mxu0 0.0
    %702 = vmatpush.msra.mxu0 0.0
    %703 = vmatpush.msra.mxu0 0.0
    %v704 = vand.u32 %v579, 4294901760
    %705 = vmatpush.msra.mxu0 %v704
    %v706 = vand.u32 %v577, 4294901760
    %707 = vmatpush.msra.mxu0 %v706
    %v708 = vand.u32 %v575, 4294901760
    %709 = vmatpush.msra.mxu0 %v708
    %v710 = vand.u32 %v573, 4294901760
    %711 = vmatpush.msra.mxu0 %v710
    %v712 = vand.u32 %v590, 4294901760
    %v713 = vsub.f32 %v590, %v712
    %v714 = vand.u32 %v713, 4294901760
    %715 = vmatmul.f32.gmra.mxu0 %v714
    %v716 = vpop.f32.mrf.mxu0
    %v717 = vadd.f32 %v690, %v716
    %718 = vdwg.mxu0
    %719 = vmatpush.msra.mxu0 0.0
    %720 = vmatpush.msra.mxu0 0.0
    %721 = vmatpush.msra.mxu0 0.0
    %722 = vmatpush.msra.mxu0 0.0
    %723 = vmatpush.msra.mxu0 0.0
    %724 = vmatpush.msra.mxu0 0.0
    %725 = vmatpush.msra.mxu0 0.0
    %726 = vmatpush.msra.mxu0 0.0
    %727 = vmatpush.msra.mxu0 0.0
    %728 = vmatpush.msra.mxu0 0.0
    %729 = vmatpush.msra.mxu0 0.0
    %730 = vmatpush.msra.mxu0 0.0
    %v731 = vand.u32 %v579, 4294901760
    %v732 = vsub.f32 %v579, %v731
    %v733 = vand.u32 %v732, 4294901760
    %734 = vmatpush.msra.mxu0 %v733
    %v735 = vand.u32 %v577, 4294901760
    %v736 = vsub.f32 %v577, %v735
    %v737 = vand.u32 %v736, 4294901760
    %738 = vmatpush.msra.mxu0 %v737
    %v739 = vand.u32 %v575, 4294901760
    %v740 = vsub.f32 %v575, %v739
    %v741 = vand.u32 %v740, 4294901760
    %742 = vmatpush.msra.mxu0 %v741
    %v743 = vand.u32 %v573, 4294901760
    %v744 = vsub.f32 %v573, %v743
    %v745 = vand.u32 %v744, 4294901760
    %746 = vmatpush.msra.mxu0 %v745
    %v747 = vand.u32 %v590, 4294901760
    %748 = vmatmul.f32.gmra.mxu0 %v747
    %v749 = vpop.f32.mrf.mxu0
    %v750 = vadd.f32 %v717, %v749
    %751 = vdwg.mxu0
    %752 = vmatpush.msra.mxu0 0.0
    %753 = vmatpush.msra.mxu0 0.0
    %754 = vmatpush.msra.mxu0 0.0
    %755 = vmatpush.msra.mxu0 0.0
    %756 = vmatpush.msra.mxu0 0.0
    %757 = vmatpush.msra.mxu0 0.0
    %758 = vmatpush.msra.mxu0 0.0
    %759 = vmatpush.msra.mxu0 0.0
    %760 = vmatpush.msra.mxu0 0.0
    %761 = vmatpush.msra.mxu0 0.0
    %762 = vmatpush.msra.mxu0 0.0
    %763 = vmatpush.msra.mxu0 0.0
    %v764 = vand.u32 %v579, 4294901760
    %765 = vmatpush.msra.mxu0 %v764
    %v766 = vand.u32 %v577, 4294901760
    %767 = vmatpush.msra.mxu0 %v766
    %v768 = vand.u32 %v575, 4294901760
    %769 = vmatpush.msra.mxu0 %v768
    %v770 = vand.u32 %v573, 4294901760
    %771 = vmatpush.msra.mxu0 %v770
    %v772 = vand.u32 %v590, 4294901760
    %773 = vmatmul.f32.gmra.mxu0 %v772
    %v774 = vpop.f32.mrf.mxu0
    %v775 = vadd.f32 %v750, %v774
    %776 = vdwg.mxu0
    %777 = vmatpush.msra.mxu0 0.0
    %778 = vmatpush.msra.mxu0 0.0
    %779 = vmatpush.msra.mxu0 0.0
    %780 = vmatpush.msra.mxu0 0.0
    %781 = vmatpush.msra.mxu0 0.0
    %782 = vmatpush.msra.mxu0 0.0
    %783 = vmatpush.msra.mxu0 0.0
    %784 = vmatpush.msra.mxu0 0.0
    %785 = vmatpush.msra.mxu0 0.0
    %786 = vmatpush.msra.mxu0 0.0
    %787 = vmatpush.msra.mxu0 0.0
    %788 = vmatpush.msra.mxu0 0.0
    %v789 = vand.u32 %v580, 4294901760
    %790 = vmatpush.msra.mxu0 %v789
    %v791 = vand.u32 %v578, 4294901760
    %792 = vmatpush.msra.mxu0 %v791
    %v793 = vand.u32 %v576, 4294901760
    %794 = vmatpush.msra.mxu0 %v793
    %v795 = vand.u32 %v574, 4294901760
    %796 = vmatpush.msra.mxu0 %v795
    %v797 = vand.u32 %v590, 4294901760
    %v798 = vsub.f32 %v590, %v797
    %v799 = vand.u32 %v798, 4294901760
    %v800 = vsub.f32 %v798, %v799
    %v801 = vand.u32 %v800, 4294901760
    %802 = vmatmul.f32.gmra.mxu0 %v801
    %v803 = vpop.f32.mrf.mxu0
    %v804 = vadd.f32 %v586, %v803
    %805 = vdwg.mxu0
    %806 = vmatpush.msra.mxu0 0.0
    %807 = vmatpush.msra.mxu0 0.0
    %808 = vmatpush.msra.mxu0 0.0
    %809 = vmatpush.msra.mxu0 0.0
    %810 = vmatpush.msra.mxu0 0.0
    %811 = vmatpush.msra.mxu0 0.0
    %812 = vmatpush.msra.mxu0 0.0
    %813 = vmatpush.msra.mxu0 0.0
    %814 = vmatpush.msra.mxu0 0.0
    %815 = vmatpush.msra.mxu0 0.0
    %816 = vmatpush.msra.mxu0 0.0
    %817 = vmatpush.msra.mxu0 0.0
    %v818 = vand.u32 %v580, 4294901760
    %v819 = vsub.f32 %v580, %v818
    %v820 = vand.u32 %v819, 4294901760
    %v821 = vsub.f32 %v819, %v820
    %v822 = vand.u32 %v821, 4294901760
    %823 = vmatpush.msra.mxu0 %v822
    %v824 = vand.u32 %v578, 4294901760
    %v825 = vsub.f32 %v578, %v824
    %v826 = vand.u32 %v825, 4294901760
    %v827 = vsub.f32 %v825, %v826
    %v828 = vand.u32 %v827, 4294901760
    %829 = vmatpush.msra.mxu0 %v828
    %v830 = vand.u32 %v576, 4294901760
    %v831 = vsub.f32 %v576, %v830
    %v832 = vand.u32 %v831, 4294901760
    %v833 = vsub.f32 %v831, %v832
    %v834 = vand.u32 %v833, 4294901760
    %835 = vmatpush.msra.mxu0 %v834
    %v836 = vand.u32 %v574, 4294901760
    %v837 = vsub.f32 %v574, %v836
    %v838 = vand.u32 %v837, 4294901760
    %v839 = vsub.f32 %v837, %v838
    %v840 = vand.u32 %v839, 4294901760
    %841 = vmatpush.msra.mxu0 %v840
    %v842 = vand.u32 %v590, 4294901760
    %843 = vmatmul.f32.gmra.mxu0 %v842
    %v844 = vpop.f32.mrf.mxu0
    %v845 = vadd.f32 %v804, %v844
    %846 = vdwg.mxu0
    %847 = vmatpush.msra.mxu0 0.0
    %848 = vmatpush.msra.mxu0 0.0
    %849 = vmatpush.msra.mxu0 0.0
    %850 = vmatpush.msra.mxu0 0.0
    %851 = vmatpush.msra.mxu0 0.0
    %852 = vmatpush.msra.mxu0 0.0
    %853 = vmatpush.msra.mxu0 0.0
    %854 = vmatpush.msra.mxu0 0.0
    %855 = vmatpush.msra.mxu0 0.0
    %856 = vmatpush.msra.mxu0 0.0
    %857 = vmatpush.msra.mxu0 0.0
    %858 = vmatpush.msra.mxu0 0.0
    %v859 = vand.u32 %v580, 4294901760
    %v860 = vsub.f32 %v580, %v859
    %861 = vmatpush.msra.mxu0 %v860
    %v862 = vand.u32 %v578, 4294901760
    %v863 = vsub.f32 %v578, %v862
    %864 = vmatpush.msra.mxu0 %v863
    %v865 = vand.u32 %v576, 4294901760
    %v866 = vsub.f32 %v576, %v865
    %867 = vmatpush.msra.mxu0 %v866
    %v868 = vand.u32 %v574, 4294901760
    %v869 = vsub.f32 %v574, %v868
    %870 = vmatpush.msra.mxu0 %v869
    %v871 = vand.u32 %v590, 4294901760
    %v872 = vsub.f32 %v590, %v871
    %873 = vmatmul.f32.gmra.mxu0 %v872
    %v874 = vpop.f32.mrf.mxu0
    %v875 = vadd.f32 %v845, %v874
    %876 = vdwg.mxu0
    %877 = vmatpush.msra.mxu0 0.0
    %878 = vmatpush.msra.mxu0 0.0
    %879 = vmatpush.msra.mxu0 0.0
    %880 = vmatpush.msra.mxu0 0.0
    %881 = vmatpush.msra.mxu0 0.0
    %882 = vmatpush.msra.mxu0 0.0
    %883 = vmatpush.msra.mxu0 0.0
    %884 = vmatpush.msra.mxu0 0.0
    %885 = vmatpush.msra.mxu0 0.0
    %886 = vmatpush.msra.mxu0 0.0
    %887 = vmatpush.msra.mxu0 0.0
    %888 = vmatpush.msra.mxu0 0.0
    %v889 = vand.u32 %v580, 4294901760
    %890 = vmatpush.msra.mxu0 %v889
    %v891 = vand.u32 %v578, 4294901760
    %892 = vmatpush.msra.mxu0 %v891
    %v893 = vand.u32 %v576, 4294901760
    %894 = vmatpush.msra.mxu0 %v893
    %v895 = vand.u32 %v574, 4294901760
    %896 = vmatpush.msra.mxu0 %v895
    %v897 = vand.u32 %v590, 4294901760
    %v898 = vsub.f32 %v590, %v897
    %v899 = vand.u32 %v898, 4294901760
    %900 = vmatmul.f32.gmra.mxu0 %v899
    %v901 = vpop.f32.mrf.mxu0
    %v902 = vadd.f32 %v875, %v901
    %903 = vdwg.mxu0
    %904 = vmatpush.msra.mxu0 0.0
    %905 = vmatpush.msra.mxu0 0.0
    %906 = vmatpush.msra.mxu0 0.0
    %907 = vmatpush.msra.mxu0 0.0
    %908 = vmatpush.msra.mxu0 0.0
    %909 = vmatpush.msra.mxu0 0.0
    %910 = vmatpush.msra.mxu0 0.0
    %911 = vmatpush.msra.mxu0 0.0
    %912 = vmatpush.msra.mxu0 0.0
    %913 = vmatpush.msra.mxu0 0.0
    %914 = vmatpush.msra.mxu0 0.0
    %915 = vmatpush.msra.mxu0 0.0
    %v916 = vand.u32 %v580, 4294901760
    %v917 = vsub.f32 %v580, %v916
    %v918 = vand.u32 %v917, 4294901760
    %919 = vmatpush.msra.mxu0 %v918
    %v920 = vand.u32 %v578, 4294901760
    %v921 = vsub.f32 %v578, %v920
    %v922 = vand.u32 %v921, 4294901760
    %923 = vmatpush.msra.mxu0 %v922
    %v924 = vand.u32 %v576, 4294901760
    %v925 = vsub.f32 %v576, %v924
    %v926 = vand.u32 %v925, 4294901760
    %927 = vmatpush.msra.mxu0 %v926
    %v928 = vand.u32 %v574, 4294901760
    %v929 = vsub.f32 %v574, %v928
    %v930 = vand.u32 %v929, 4294901760
    %931 = vmatpush.msra.mxu0 %v930
    %v932 = vand.u32 %v590, 4294901760
    %933 = vmatmul.f32.gmra.mxu0 %v932
    %v934 = vpop.f32.mrf.mxu0
    %v935 = vadd.f32 %v902, %v934
    %936 = vdwg.mxu0
    %937 = vmatpush.msra.mxu0 0.0
    %938 = vmatpush.msra.mxu0 0.0
    %939 = vmatpush.msra.mxu0 0.0
    %940 = vmatpush.msra.mxu0 0.0
    %941 = vmatpush.msra.mxu0 0.0
    %942 = vmatpush.msra.mxu0 0.0
    %943 = vmatpush.msra.mxu0 0.0
    %944 = vmatpush.msra.mxu0 0.0
    %945 = vmatpush.msra.mxu0 0.0
    %946 = vmatpush.msra.mxu0 0.0
    %947 = vmatpush.msra.mxu0 0.0
    %948 = vmatpush.msra.mxu0 0.0
    %v949 = vand.u32 %v580, 4294901760
    %950 = vmatpush.msra.mxu0 %v949
    %v951 = vand.u32 %v578, 4294901760
    %952 = vmatpush.msra.mxu0 %v951
    %v953 = vand.u32 %v576, 4294901760
    %954 = vmatpush.msra.mxu0 %v953
    %v955 = vand.u32 %v574, 4294901760
    %956 = vmatpush.msra.mxu0 %v955
    %v957 = vand.u32 %v590, 4294901760
    %958 = vmatmul.f32.gmra.mxu0 %v957
    %v959 = vpop.f32.mrf.mxu0
    %v960 = vadd.f32 %v935, %v959
    %961 = vdwg.mxu0
    %v962 = vmul.f32 %v775, 0.5
    %v963 = vmul.f32 %v960, 0.5
    %v964 = vmul.f32 %v962, 1.442695
    %v965 = vpow.pop %v964
    %v966 = vmul.f32 %v963, 1.442695
    %v967 = vpow.pop %v966
    %v968 = vld [vmem:[%s5] sm:$0xff]
    %v969 = vld [vmem:[%s5 + $0x8] sm:$0xff]
    %v970 = vmul.f32 %v965, %v968
    %v971 = vmul.f32 %v967, %v969
    %v972 = vadd.f32 %v775, %v970
    %v973 = vadd.f32 %v960, %v971
    %974 = vst [vmem:[#allocation2] sm:$0xff] %v972
    %975 = vst [vmem:[#allocation2 + $0x8] sm:$0xff] %v973
    // Predicated region
    $region26: #{bnn_forward.1} parent=1 // pred_check
      _
    $region27: #{bnn_forward.1} parent=1 // pred_check_branch
      %977 = sbr.rel (0) target = $region29
    $region28: #{bnn_forward.1} parent=1 // pred_region
      %979 = vsyncadd [#allocation3], 0
      %s981 = sshll.u32 [#allocation2], 4
      %s982 = int_to_ptr.vmem [resolvable:$true] %s981
      %s983 = sshll.u32 %s6, 4
      %s984 = int_to_ptr.hbm [resolvable:$true] %s983
      %986 = dma.vmem_to_hbm [thread:$0]  %s982, 256, %s984, [#allocation3]
    $region29: #{bnn_forward.1} parent=1 // pred_fallthru
      _
    // Predicated region
    $region30: #{bnn_forward.1} parent=1 // pred_check
      _
    $region31: #{bnn_forward.1} parent=1 // pred_check_branch
      %988 = sbr.rel (0) target = $region33
    $region32: #{bnn_forward.1} parent=1 // pred_region
      %990 = dma.done [#allocation3], 256
    $region33: #{bnn_forward.1} parent=1 // pred_fallthru
      _
    %991 = vsyncpa [#allocation3], 1

</llo_original>
